<compile_context>
chip_gen: v5e
topology: v5e:2x2
jax: 0.10.0
libtpu: 0.0.40
codegen_flags: <defaults>
</compile_context>

<pallas_src>
import numpy as np
import jax
import jax.numpy as jnp
from jax.experimental import pallas as pl
from jax.experimental.pallas import tpu as pltpu


# ----------------------------- Pallas kernel ------------------------------ #
def _unpool_kernel(w_ref, x_ref, o_ref):
    # w_ref: (C_out, C_in)   fixed binary unpool matrix
    # x_ref: (C_in, TL)      lane block of the (batch-folded) input
    # o_ref: (C_out, TL)
    o_ref[...] = jnp.dot(
        w_ref[...], x_ref[...], preferred_element_type=jnp.float32
    ).astype(o_ref.dtype)


def skeleton_unpool_forward(weight, x, *, lane_block=512):
    """out = weight @ x  (broadcast over batch).

    weight: (C_out, C_in) float32, fixed 0/1 matrix.
    x:      (N, C_in, T) or (C_in, T) float32.
    returns same leading layout with C_in -> C_out.
    """
    squeeze_batch = False
    if x.ndim == 2:
        x = x[None]
        squeeze_batch = True
    N, C_in, T = x.shape
    C_out = weight.shape[0]
    assert weight.shape[1] == C_in

    # Fold batch into the lane (time) axis: (C_in, N*T).  Pure layout plumbing
    # in the wrapper so the kernel sees one lane-dense slab.
    x2d = jnp.transpose(x, (1, 0, 2)).reshape(C_in, N * T)
    L = N * T

    # Lane block: multiple of 128, at most `lane_block`, at least one vreg row.
    TL = min(lane_block, pl.cdiv(L, 128) * 128)
    L_pad = pl.cdiv(L, TL) * TL
    if L_pad != L:
        x2d = jnp.pad(x2d, ((0, 0), (0, L_pad - L)))

    grid = (L_pad // TL,)

    out2d = pl.pallas_call(
        _unpool_kernel,
        out_shape=jax.ShapeDtypeStruct((C_out, L_pad), x.dtype),
        grid=grid,
        in_specs=[
            pl.BlockSpec((C_out, C_in), lambda l: (0, 0)),  # weight, resident
            pl.BlockSpec((C_in, TL), lambda l: (0, l)),     # input lane block
        ],
        out_specs=pl.BlockSpec((C_out, TL), lambda l: (0, l)),
        compiler_params=pltpu.CompilerParams(
            dimension_semantics=("parallel",)),
    )(weight, x2d)

    out = out2d[:, :L].reshape(C_out, N, T).transpose(1, 0, 2)
    if squeeze_batch:
        out = out[0]
    return out


# --------------------- static unpool-weight construction ------------------- #
def build_skeleton_unpool_weight(pooling_list, channels_per_edge):
    input_edge_num = len(pooling_list)
    output_edge_num = sum(len(t) for t in pooling_list)
    w = np.zeros(
        (output_edge_num * channels_per_edge,
         input_edge_num * channels_per_edge),
        dtype=np.float32,
    )
    for i, pair in enumerate(pooling_list):
        for j in pair:
            for c in range(channels_per_edge):
                w[j * channels_per_edge + c, i * channels_per_edge + c] = 1.0
    return jnp.asarray(w)


# ---------------------------------- main ----------------------------------- #
if __name__ == "__main__":
    # Small, deterministic example consistent with the module:
    # 3 pooled (input) edges unpooled to 7 output edges, 4 channels per edge.
    pooling_list = [[0, 1], [2, 3], [4, 5, 6]]
    channels_per_edge = 4
    in_edges = len(pooling_list)                      # 3
    out_edges = sum(len(t) for t in pooling_list)     # 7
    C_in = in_edges * channels_per_edge               # 12
    C_out = out_edges * channels_per_edge             # 28
    N, T = 2, 16

    key = jax.random.PRNGKey(0)
    x = jax.random.normal(key, (N, C_in, T), dtype=jnp.float32)

    weight = build_skeleton_unpool_weight(pooling_list, channels_per_edge)

    out = skeleton_unpool_forward(weight, x)
    out = jax.block_until_ready(out)
    assert out.shape == (N, C_out, T)

    # pure-JAX reference:  torch.matmul(weight, input) with batch broadcast
    ref = jnp.einsum("oc,nct->not", weight, x)
    np.testing.assert_allclose(np.asarray(out), np.asarray(ref),
                               rtol=1e-6, atol=1e-6)

    # also exercise the unbatched (C_in, T) path torch.matmul would accept
    out2 = jax.block_until_ready(skeleton_unpool_forward(weight, x[0]))
    np.testing.assert_allclose(np.asarray(out2), np.asarray(weight @ x[0]),
                               rtol=1e-6, atol=1e-6)

    print("KERNEL_OK")
</pallas_src>

<mosaic_0001>
module attributes {stable_mosaic.version = 11 : i64} {
  func.func @_unpool_kernel(%arg0: i32, %arg1: memref<28x12xf32, #tpu.memory_space<vmem>>, %arg2: memref<12x128xf32, #tpu.memory_space<vmem>>, %arg3: memref<28x128xf32, #tpu.memory_space<vmem>>) attributes {dimension_semantics = [#tpu.dimension_semantics<parallel>], iteration_bounds = array<i64: 1>, scalar_prefetch = 0 : i64, scratch_operands = 0 : i64, tpu.core_type = #tpu.core_type<tc>, window_params = [{pipeline_mode = #tpu.pipeline_mode<synchronous>, transform_indices = @transform_0, window_bounds = array<i64: 28, 12>}, {transform_indices = @transform_1, window_bounds = array<i64: 12, 128>}, {transform_indices = @transform_2, window_bounds = array<i64: 28, 128>}]} {
    %c0 = arith.constant 0 : index
    %c0_0 = arith.constant 0 : index
    %0 = vector.load %arg1[%c0, %c0_0] : memref<28x12xf32, #tpu.memory_space<vmem>>, vector<28x12xf32>
    %c0_1 = arith.constant 0 : index
    %c0_2 = arith.constant 0 : index
    %1 = vector.load %arg2[%c0_1, %c0_2] : memref<12x128xf32, #tpu.memory_space<vmem>>, vector<12x128xf32>
    %cst = arith.constant dense<0.000000e+00> : vector<28x128xf32>
    %2 = tpu.matmul %0, %1, %cst {dimension_numbers = #tpu.dot_dimension_numbers<[1], [0], [0], [1], [0, 0, 1, 1], [], []>} : vector<28x12xf32>, vector<12x128xf32>, vector<28x128xf32> -> vector<28x128xf32>
    %c0_3 = arith.constant 0 : index
    %c0_4 = arith.constant 0 : index
    %3 = vector.load %arg3[%c0_3, %c0_4] : memref<28x128xf32, #tpu.memory_space<vmem>>, vector<28x128xf32>
    tpu.vector_store %arg3[%c0_3, %c0_4], %2 {strides = array<i32>} : memref<28x128xf32, #tpu.memory_space<vmem>>, vector<28x128xf32>,
    return
  }
  func.func @transform_0(%arg0: i32) -> (i32, i32) {
    %c0_i32 = arith.constant 0 : i32
    %c0_i32_0 = arith.constant 0 : i32
    %c0_i32_1 = arith.constant 0 : i32
    return %c0_i32, %c0_i32_0 : i32, i32
  }
  func.func @transform_1(%arg0: i32) -> (i32, i32) {
    %c0_i32 = arith.constant 0 : i32
    %c0_i32_0 = arith.constant 0 : i32
    return %c0_i32, %arg0 : i32, i32
  }
  func.func @transform_2(%arg0: i32) -> (i32, i32) {
    %c0_i32 = arith.constant 0 : i32
    %c0_i32_0 = arith.constant 0 : i32
    return %c0_i32, %arg0 : i32, i32
  }
}

</mosaic_0001>

<llo_original>
// kernel: tpu_custom_call.1
$region0: #{tpu_custom_call.1}
  #allocation0 [shape = 'u32[]', space=smem, size = 0x4, offset = 0x4, fixed_abs, tag = 'smem constant byte address 0x4 - core index']
  #allocation1 [shape = 'u32[72,128]{1,0:T(1,128)}', space=vmem, size = 0x9000, scoped, tag = 'internal scratch']
  %s0 = inlined_call_operand.vmem [shape: f32[28,12], index: 0, kind: input, shape index: {}]
  %s1 = inlined_call_operand.vmem [shape: f32[12,128], index: 1, kind: input, shape index: {}]
  %s2 = inlined_call_operand.hbm [shape: f32[28,128], index: 2, kind: output, shape index: {}]
  %s3 = sld [smem:[#allocation0]]
  $region18: #{tpu_custom_call.1} parent=0
    _
  %s5 = ssub.s32 1, %s3
  %s6 = scalar_select 0, %s5, %s3
  $region1: #{tpu_custom_call.1} parent=0
    #allocation2 [shape = 'u8[16384]{0}', space=vmem, size = 0x4000, scoped, tag = 'output window, operand 0, single buffered']
    #allocation3 [shape = 's32[1]{0}', space=sflag, size = 0x4, scoped, tag = 'scoped memory for tpu_custom_call.1']
    %7 = vsyncpa [#allocation3], 0
    // Predicated region
    $region2: #{tpu_custom_call.1} parent=1 // pred_check
      _
    $region3: #{tpu_custom_call.1} parent=1 // pred_check_branch
      %9 = sbr.rel (0) target = $region5
    $region4: #{tpu_custom_call.1} parent=1 // pred_region
      _
    $region5: #{tpu_custom_call.1} parent=1 // pred_fallthru
      _
    // Predicated region
    $region6: #{tpu_custom_call.1} parent=1 // pred_check
      _
    $region7: #{tpu_custom_call.1} parent=1 // pred_check_branch
      %11 = sbr.rel (0) target = $region9
    $region8: #{tpu_custom_call.1} parent=1 // pred_region
      _
    $region9: #{tpu_custom_call.1} parent=1 // pred_fallthru
      _
    %v12 = vld [vmem:[%s0] sm:$0xff]
    %v13 = vld [vmem:[%s0 + $0x8] sm:$0xff]
    %v14 = vld [vmem:[%s0 + $0x10] sm:$0xff]
    %v15 = vld [vmem:[%s0 + $0x18] sm:$0xf]
    %v16 = vld [vmem:[%s1] sm:$0xff]
    %v17 = vld [vmem:[%s1 + $0x8] sm:$0xf]
    %vm18 = vcmask 97280
    %v20 = vsel %vm18, %v12, 0
    %v23 = vsel %vm18, %v13, 0
    %v26 = vsel %vm18, %v14, 0
    %v29 = vsel %vm18, %v15, 0
    %vm31 = vcmask 1043456
    %v33 = vsel %vm31, %v17, 0
    %35 = vmatpush.msra.mxu0 0.0
    %36 = vmatpush.msra.mxu0 0.0
    %37 = vmatpush.msra.mxu0 0.0
    %38 = vmatpush.msra.mxu0 0.0
    %39 = vmatpush.msra.mxu0 0.0
    %40 = vmatpush.msra.mxu0 0.0
    %41 = vmatpush.msra.mxu0 0.0
    %42 = vmatpush.msra.mxu0 0.0
    %43 = vmatpush.msra.mxu0 0.0
    %44 = vmatpush.msra.mxu0 0.0
    %45 = vmatpush.msra.mxu0 0.0
    %46 = vmatpush.msra.mxu0 0.0
    %47 = vmatpush.msra.mxu0 0.0
    %48 = vmatpush.msra.mxu0 0.0
    %49 = vmatpush.msra.mxu0 %v33
    %50 = vmatpush.msra.mxu0 %v16
    %51 = vmatmul.f32.gmra.mxu0 %v20
    %v52 = vpop.f32.mrf.mxu0
    %v53 = vadd.f32 0.0, %v52
    %54 = vmatmul.f32.gmra.mxu0 %v23
    %v55 = vpop.f32.mrf.mxu0
    %v56 = vadd.f32 0.0, %v55
    %57 = vmatmul.f32.gmra.mxu0 %v26
    %v58 = vpop.f32.mrf.mxu0
    %v59 = vadd.f32 0.0, %v58
    %60 = vmatmul.f32.gmra.mxu0 %v29
    %v61 = vpop.f32.mrf.mxu0
    %v62 = vadd.f32 0.0, %v61
    %63 = vdwg.mxu0
    %64 = vst [vmem:[#allocation2] sm:$0xff] %v53
    %65 = vst [vmem:[#allocation2 + $0x8] sm:$0xff] %v56
    %66 = vst [vmem:[#allocation2 + $0x10] sm:$0xff] %v59
    %67 = vst [vmem:[#allocation2 + $0x18] sm:$0xf] %v62
    // Predicated region
    $region10: #{tpu_custom_call.1} parent=1 // pred_check
      _
    $region11: #{tpu_custom_call.1} parent=1 // pred_check_branch
      %69 = sbr.rel (0) target = $region13
    $region12: #{tpu_custom_call.1} parent=1 // pred_region
      %71 = vsyncadd [#allocation3], 0
      %s72 = sshll.u32 [#allocation2], 4
      %s73 = int_to_ptr.vmem [resolvable:$true] %s72
      %s74 = sshll.u32 %s2, 4
      %s75 = int_to_ptr.hbm [resolvable:$true] %s74
      %80 = dma.vmem_to_hbm [thread:$0]  %s73, 512, %s75, [#allocation3], 128, 128, 8
    $region13: #{tpu_custom_call.1} parent=1 // pred_fallthru
      _
    // Predicated region
    $region14: #{tpu_custom_call.1} parent=1 // pred_check
      _
    $region15: #{tpu_custom_call.1} parent=1 // pred_check_branch
      %82 = sbr.rel (0) target = $region17
    $region16: #{tpu_custom_call.1} parent=1 // pred_region
      %84 = dma.done [#allocation3], 512
    $region17: #{tpu_custom_call.1} parent=1 // pred_fallthru
      _
    %85 = vsyncpa [#allocation3], 1

</llo_original>
